<compile_context>
chip_gen: v5e
topology: v5e:2x2
jax: 0.10.0
libtpu: 0.0.40
codegen_flags: <defaults>
</compile_context>

<pallas_src>
import jax
import jax.numpy as jnp
from jax.experimental import pallas as pl
from jax.experimental.pallas import tpu as pltpu


def se_kernel(x_ref, w1_ref, w2_ref, bias_ref, o_ref):
    # x_ref block: (B_blk, C, HW) -- NCHW with spatial flattened onto lanes.
    hw = x_ref.shape[-1]
    cr = w1_ref.shape[1]

    # Global average pool: cross-lane reduction over HW -> (B_blk, C).
    pooled = jnp.sum(x_ref[...], axis=-1) * (1.0 / hw)

    # fc1 + ReLU, batched over the batch block: (B_blk, C) @ (C, Cr).
    h = jnp.dot(pooled, w1_ref[...], preferred_element_type=jnp.float32)
    h = jnp.maximum(h + bias_ref[0:1, 0:cr], 0.0)                # (B_blk, Cr)

    # fc2 + Sigmoid: (B_blk, Cr) @ (Cr, C).
    y = jnp.dot(h, w2_ref[...], preferred_element_type=jnp.float32)
    y = jax.nn.sigmoid(y + bias_ref[1:2, :])                     # (B_blk, C)

    # Channel-wise scale, broadcast across the HW lane axis.  Re-read x from
    # the ref so the store loop streams per-vreg instead of keeping a
    # multi-MiB value nominally live across pool -> fc -> sigmoid.
    o_ref[...] = x_ref[...] * y[:, :, None]


def _choose_batch_block(B, bytes_per_batch, max_block_bytes=3 << 20):
    """Pick the batch-block size.

    Targets min(B, 8) grid steps (balanced, pipelined work for v7x's two
    TensorCores under the 'parallel' batch axis; per-step overhead ~0.35 us is
    negligible for this mem-bound kernel) while keeping each x/out block under
    max_block_bytes so the double-buffered in+out total (~4x) fits comfortably
    under the default scoped-VMEM limit on v5e (16 MiB), v6e and v7x (32 MiB).
    The block size must divide B.
    """
    target_steps = min(B, 8)
    bb = max(1, B // target_steps)
    while bb > 1 and (B % bb != 0 or bb * bytes_per_batch > max_block_bytes):
        bb -= 1
    return bb


def se_block(x_nchw, w1, b1, w2, b2, *, donate_x=False):
    """SEBlock forward. x_nchw: (B, C, H, W) f32; w1: (C, Cr); w2: (Cr, C)."""
    B, C, H, W = x_nchw.shape
    HW = H * W
    Cr = w1.shape[1]
    itemsize = x_nchw.dtype.itemsize

    # Free reshape of the native NCHW buffer (no transpose, no data movement).
    x = x_nchw.reshape(B, C, HW)

    # Pack both biases into one (2, C) buffer: row 0 = b1 (zero-padded), row 1 = b2.
    bias_pack = jnp.zeros((2, C), x.dtype)
    bias_pack = bias_pack.at[0, :Cr].set(b1.astype(x.dtype))
    bias_pack = bias_pack.at[1, :].set(b2.astype(x.dtype))

    bytes_per_batch = C * HW * itemsize
    B_blk = _choose_batch_block(B, bytes_per_batch)
    grid = (B // B_blk,)

    # Explicit VMEM budget: x block + out block, each double-buffered, plus
    # (double-buffered) params and ~1 MiB slack for compiler scratch.  Clamp
    # to 48 MiB so we never ask for more than v7x's 64 MiB physical VMEM
    # can comfortably give.
    block_bytes = B_blk * bytes_per_batch
    weight_bytes = (C * Cr + Cr * C + 2 * C) * itemsize
    vmem_need = 4 * block_bytes + 4 * weight_bytes + (1 << 20)
    vmem_limit = int(min(max(vmem_need, 4 << 20), 48 << 20))

    # Advisory cost hint: this kernel is HBM-bandwidth bound (read + write x).
    cost = pl.CostEstimate(
        flops=2 * B * C * HW + 4 * B * C * Cr + 2 * B * C,
        transcendentals=B * C,
        bytes_accessed=2 * B * C * HW * itemsize + weight_bytes,
    )

    out = pl.pallas_call(
        se_kernel,
        out_shape=jax.ShapeDtypeStruct((B, C, HW), x.dtype),
        grid_spec=pltpu.PrefetchScalarGridSpec(
            num_scalar_prefetch=0,
            grid=grid,
            in_specs=[
                pl.BlockSpec((B_blk, C, HW), lambda i: (i, 0, 0)),  # x
                pl.BlockSpec((C, Cr), lambda i: (0, 0)),            # W1
                pl.BlockSpec((Cr, C), lambda i: (0, 0)),            # W2
                pl.BlockSpec((2, C), lambda i: (0, 0)),             # [b1; b2]
            ],
            out_specs=pl.BlockSpec((B_blk, C, HW), lambda i: (i, 0, 0)),
        ),
        compiler_params=pltpu.CompilerParams(
            dimension_semantics=("parallel",),
            vmem_limit_bytes=vmem_limit,
        ),
        cost_estimate=cost,
        # Safe because every x block is fully read before its matching output
        # block is written; enables donating x's HBM buffer in production.
        input_output_aliases=({0: 0} if donate_x else {}),
    )(x, w1, w2, bias_pack)

    return out.reshape(B, C, H, W)


if __name__ == "__main__":
    # Shapes consistent with SEBlock(channel=32, reduction=16)
    B, C, H, W = 2, 32, 16, 16
    reduction = 16
    Cr = C // reduction

    key = jax.random.PRNGKey(0)
    kx, k1, k2, k3, k4 = jax.random.split(key, 5)

    x = jax.random.normal(kx, (B, C, H, W), dtype=jnp.float32)

    # Deterministic parameter init (PyTorch Linear-style uniform bounds),
    # stored as (in_features, out_features) so the kernel does row @ W.
    bound1 = 1.0 / (C ** 0.5)
    w1 = jax.random.uniform(k1, (C, Cr), jnp.float32, -bound1, bound1)
    b1 = jax.random.uniform(k2, (Cr,), jnp.float32, -bound1, bound1)
    bound2 = 1.0 / (Cr ** 0.5)
    w2 = jax.random.uniform(k3, (Cr, C), jnp.float32, -bound2, bound2)
    b2 = jax.random.uniform(k4, (C,), jnp.float32, -bound2, bound2)

    out = se_block(x, w1, b1, w2, b2, donate_x=False)
    out = jax.block_until_ready(out)

    # Pure-JAX reference (mirrors the PyTorch forward exactly).
    pooled = jnp.mean(x, axis=(2, 3))                       # (B, C)
    h = jnp.maximum(pooled @ w1 + b1, 0.0)                  # (B, Cr)
    y = jax.nn.sigmoid(h @ w2 + b2)                         # (B, C)
    ref = x * y[:, :, None, None]

    assert out.shape == (B, C, H, W)
    assert jnp.allclose(out, ref, atol=1e-5, rtol=1e-5), "mismatch vs reference"
    print("KERNEL_OK")
</pallas_src>

<mosaic_0001>
module attributes {stable_mosaic.version = 11 : i64} {
  func.func @se_kernel(%arg0: i32, %arg1: memref<1x32x256xf32, #tpu.memory_space<vmem>>, %arg2: memref<32x2xf32, #tpu.memory_space<vmem>>, %arg3: memref<2x32xf32, #tpu.memory_space<vmem>>, %arg4: memref<2x32xf32, #tpu.memory_space<vmem>>, %arg5: memref<1x32x256xf32, #tpu.memory_space<vmem>>) attributes {dimension_semantics = [#tpu.dimension_semantics<parallel>], iteration_bounds = array<i64: 2>, scalar_prefetch = 0 : i64, scratch_operands = 0 : i64, tpu.core_type = #tpu.core_type<tc>, window_params = [{transform_indices = @transform_0, window_bounds = array<i64: 1, 32, 256>}, {pipeline_mode = #tpu.pipeline_mode<synchronous>, transform_indices = @transform_1, window_bounds = array<i64: 32, 2>}, {pipeline_mode = #tpu.pipeline_mode<synchronous>, transform_indices = @transform_2, window_bounds = array<i64: 2, 32>}, {pipeline_mode = #tpu.pipeline_mode<synchronous>, transform_indices = @transform_3, window_bounds = array<i64: 2, 32>}, {transform_indices = @transform_4, window_bounds = array<i64: 1, 32, 256>}]} {
    %c0 = arith.constant 0 : index
    %c0_0 = arith.constant 0 : index
    %c0_1 = arith.constant 0 : index
    %0 = vector.load %arg1[%c0, %c0_0, %c0_1] : memref<1x32x256xf32, #tpu.memory_space<vmem>>, vector<1x32x256xf32>
    %cst = arith.constant dense<0.000000e+00> : vector<1x32xf32>
    %1 = vector.multi_reduction <add>, %0, %cst [2] : vector<1x32x256xf32> to vector<1x32xf32>
    %cst_2 = arith.constant 3.906250e-03 : f32
    %2 = vector.broadcast %cst_2 : f32 to vector<1x32xf32>
    %3 = arith.mulf %1, %2 : vector<1x32xf32>
    %c0_3 = arith.constant 0 : index
    %c0_4 = arith.constant 0 : index
    %4 = vector.load %arg2[%c0_3, %c0_4] : memref<32x2xf32, #tpu.memory_space<vmem>>, vector<32x2xf32>
    %cst_5 = arith.constant dense<0.000000e+00> : vector<1x2xf32>
    %5 = tpu.matmul %3, %4, %cst_5 {dimension_numbers = #tpu.dot_dimension_numbers<[1], [0], [0], [1], [0, 0, 1, 1], [], []>} : vector<1x32xf32>, vector<32x2xf32>, vector<1x2xf32> -> vector<1x2xf32>
    %c0_6 = arith.constant 0 : index
    %c0_7 = arith.constant 0 : index
    %6 = vector.load %arg4[%c0_6, %c0_7] : memref<2x32xf32, #tpu.memory_space<vmem>>, vector<1x2xf32>
    %7 = arith.addf %5, %6 : vector<1x2xf32>
    %cst_8 = arith.constant 0.000000e+00 : f32
    %8 = vector.broadcast %cst_8 : f32 to vector<1x2xf32>
    %9 = arith.maximumf %7, %8 : vector<1x2xf32>
    %c0_9 = arith.constant 0 : index
    %c0_10 = arith.constant 0 : index
    %10 = vector.load %arg3[%c0_9, %c0_10] : memref<2x32xf32, #tpu.memory_space<vmem>>, vector<2x32xf32>
    %cst_11 = arith.constant dense<0.000000e+00> : vector<1x32xf32>
    %11 = tpu.matmul %9, %10, %cst_11 {dimension_numbers = #tpu.dot_dimension_numbers<[1], [0], [0], [1], [0, 0, 1, 1], [], []>} : vector<1x2xf32>, vector<2x32xf32>, vector<1x32xf32> -> vector<1x32xf32>
    %c1 = arith.constant 1 : index
    %c0_12 = arith.constant 0 : index
    %12 = vector.load %arg4[%c1, %c0_12] : memref<2x32xf32, #tpu.memory_space<vmem>>, vector<1x32xf32>
    %13 = arith.addf %11, %12 : vector<1x32xf32>
    %14 = arith.negf %13 : vector<1x32xf32>
    %15 = math.exp %14 : vector<1x32xf32>
    %cst_13 = arith.constant 1.000000e+00 : f32
    %16 = vector.broadcast %cst_13 : f32 to vector<1x32xf32>
    %17 = arith.addf %16, %15 : vector<1x32xf32>
    %18 = arith.divf %16, %17 : vector<1x32xf32>
    %c0_14 = arith.constant 0 : index
    %c0_15 = arith.constant 0 : index
    %c0_16 = arith.constant 0 : index
    %19 = vector.load %arg1[%c0_14, %c0_15, %c0_16] : memref<1x32x256xf32, #tpu.memory_space<vmem>>, vector<1x32x256xf32>
    %20 = vector.shape_cast %18 : vector<1x32xf32> to vector<1x32x1xf32>
    %21 = vector.broadcast %20 : vector<1x32x1xf32> to vector<1x32x256xf32>
    %22 = arith.mulf %19, %21 : vector<1x32x256xf32>
    %c0_17 = arith.constant 0 : index
    %c0_18 = arith.constant 0 : index
    %c0_19 = arith.constant 0 : index
    %23 = vector.load %arg5[%c0_17, %c0_18, %c0_19] : memref<1x32x256xf32, #tpu.memory_space<vmem>>, vector<1x32x256xf32>
    tpu.vector_store %arg5[%c0_17, %c0_18, %c0_19], %22 {strides = array<i32>} : memref<1x32x256xf32, #tpu.memory_space<vmem>>, vector<1x32x256xf32>,
    return
  }
  func.func @transform_0(%arg0: i32) -> (i32, i32, i32) {
    %c0_i32 = arith.constant 0 : i32
    %c0_i32_0 = arith.constant 0 : i32
    %c0_i32_1 = arith.constant 0 : i32
    return %arg0, %c0_i32, %c0_i32_0 : i32, i32, i32
  }
  func.func @transform_1(%arg0: i32) -> (i32, i32) {
    %c0_i32 = arith.constant 0 : i32
    %c0_i32_0 = arith.constant 0 : i32
    %c0_i32_1 = arith.constant 0 : i32
    return %c0_i32, %c0_i32_0 : i32, i32
  }
  func.func @transform_2(%arg0: i32) -> (i32, i32) {
    %c0_i32 = arith.constant 0 : i32
    %c0_i32_0 = arith.constant 0 : i32
    %c0_i32_1 = arith.constant 0 : i32
    return %c0_i32, %c0_i32_0 : i32, i32
  }
  func.func @transform_3(%arg0: i32) -> (i32, i32) {
    %c0_i32 = arith.constant 0 : i32
    %c0_i32_0 = arith.constant 0 : i32
    %c0_i32_1 = arith.constant 0 : i32
    return %c0_i32, %c0_i32_0 : i32, i32
  }
  func.func @transform_4(%arg0: i32) -> (i32, i32, i32) {
    %c0_i32 = arith.constant 0 : i32
    %c0_i32_0 = arith.constant 0 : i32
    %c0_i32_1 = arith.constant 0 : i32
    return %arg0, %c0_i32, %c0_i32_0 : i32, i32, i32
  }
}

</mosaic_0001>

<llo_original>
// kernel: tpu_custom_call.1
$region0: #{tpu_custom_call.1}
  #allocation0 [shape = 'u32[]', space=smem, size = 0x4, offset = 0x4, fixed_abs, tag = 'smem constant byte address 0x4 - core index']
  #allocation1 [shape = 'u32[72,128]{1,0:T(1,128)}', space=vmem, size = 0x9000, scoped, tag = 'internal scratch']
  %s0 = inlined_call_operand.hbm [shape: f32[2,32,256], index: 0, kind: input, shape index: {}]
  %s1 = inlined_call_operand.vmem [shape: f32[32,2], index: 1, kind: input, shape index: {}]
  %s2 = inlined_call_operand.vmem [shape: f32[2,32], index: 2, kind: input, shape index: {}]
  %s3 = inlined_call_operand.vmem [shape: f32[2,32], index: 3, kind: input, shape index: {}]
  %s4 = inlined_call_operand.hbm [shape: f32[2,32,256], index: 4, kind: output, shape index: {}]
  %s5 = sld [smem:[#allocation0]]
  $region53: #{tpu_custom_call.1} parent=0
    _
  %s7 = ssub.s32 1, %s5
  %s8 = scalar_select 0, %s7, %s5
  $region1: #{tpu_custom_call.1} parent=0
    #allocation2 [shape = 'u8[65536]{0}', space=vmem, size = 0x10000, scoped, tag = 'input window, operand 0']
    #allocation3 [shape = 's32[2]{0}', space=sflag, size = 0x8, scoped, tag = 'scoped memory for tpu_custom_call.1']
    #allocation4 [shape = 's32[2]{0}', space=sflag, size = 0x8, scoped, tag = 'scoped memory for tpu_custom_call.1']
    #allocation5 [shape = 'u8[65536]{0}', space=vmem, size = 0x10000, scoped, tag = 'output window, operand 0']
    %9 = vsyncpa [#allocation3], 0
    %s10 = scalar_lea.sflag [#allocation3], 1
    %11 = vsyncpa %s10, 0
    %12 = vsyncpa [#allocation4], 0
    %s13 = scalar_lea.sflag [#allocation4], 1
    %14 = vsyncpa %s13, 0
    loop: start=0, step=1, limit=4
    $region2: #{tpu_custom_call.1} parent=1 // loop_pre_header
      _
    $region3: #{tpu_custom_call.1} parent=1 // loop_header
      %s16 = sphi 0, %s20
      %p17 = scmp.ge.s32.totalorder %s16, 4
      %s26 = sphi 0, %s28
      %s29 = sphi 0, %s26
      %s30 = sphi 0, %s29
      %s46 = sphi 0, %s30
      %s50 = sphi 0, %s50
      %s52 = sphi 0, %s50
      %s53 = sphi 0, %s52
      %s67 = sphi 0, %s53
      %s71 = sphi 0, %s71
      %s73 = sphi 0, %s71
      %s74 = sphi 0, %s73
      %s88 = sphi 0, %s74
      %s92 = sphi 0, %s92
      %s94 = sphi 0, %s92
      %s95 = sphi 0, %s94
      %s109 = sphi 0, %s95
      %s115 = sphi 0, %s117
      %s118 = sphi 0, %s115
      %s119 = sphi 0, %s118
      %s135 = sphi 0, %s119
    $region4: #{tpu_custom_call.1} parent=1 // loop_header_branch
      %19 = sbr.rel (%p17) target = $region8
    $region5: #{tpu_custom_call.1} parent=1 // loop_body
      %s21 = ssub.s32 %s16, 1
      %s22 = ssub.s32 %s16, 2
      %s23 = sadd.s32 %s16, 1
      %s24 = ssub.s32 %s16, %s23
      %p25 = scmp.eq.s32.totalorder %s24, 0
      %s27 = sadd.s32 %s26, 1
      %s28 = scalar_select %p25, %s26, %s27
      %p31 = pneg %p25
      %p32 = scmp.eq.s32.totalorder %s16, 1
      %p33 = por %p31, %p32
      %p34 = scmp.ne.s32.totalorder %s26, %s29
      %p35 = scmp.eq.s32.totalorder %s16, 0
      %p36 = por %p34, %p35
      %p37 = scmp.ne.s32.totalorder %s26, %s29
      %p38 = scmp.eq.s32.totalorder %s21, 1
      %p39 = por %p37, %p38
      %p40 = scmp.ne.s32.totalorder %s29, %s30
      %p41 = scmp.eq.s32.totalorder %s21, 0
      %p42 = por %p40, %p41
      %p43 = scmp.ne.s32.totalorder %s29, %s30
      %p44 = scmp.eq.s32.totalorder %s22, 1
      %p45 = por %p43, %p44
      %p47 = scmp.ne.s32.totalorder %s30, %s46
      %p48 = scmp.eq.s32.totalorder %s22, 0
      %p49 = por %p47, %p48
      %s51 = sadd.s32 %s50, 1
      %p54 = scmp.eq.s32.totalorder %s16, 1
      %p55 = scmp.ne.s32.totalorder %s50, %s52
      %p56 = scmp.eq.s32.totalorder %s16, 0
      %p57 = por %p55, %p56
      %p58 = scmp.ne.s32.totalorder %s50, %s52
      %p59 = scmp.eq.s32.totalorder %s21, 1
      %p60 = por %p58, %p59
      %p61 = scmp.ne.s32.totalorder %s52, %s53
      %p62 = scmp.eq.s32.totalorder %s21, 0
      %p63 = por %p61, %p62
      %p64 = scmp.ne.s32.totalorder %s52, %s53
      %p65 = scmp.eq.s32.totalorder %s22, 1
      %p66 = por %p64, %p65
      %p68 = scmp.ne.s32.totalorder %s53, %s67
      %p69 = scmp.eq.s32.totalorder %s22, 0
      %p70 = por %p68, %p69
      %s72 = sadd.s32 %s71, 1
      %p75 = scmp.eq.s32.totalorder %s16, 1
      %p76 = scmp.ne.s32.totalorder %s71, %s73
      %p77 = scmp.eq.s32.totalorder %s16, 0
      %p78 = por %p76, %p77
      %p79 = scmp.ne.s32.totalorder %s71, %s73
      %p80 = scmp.eq.s32.totalorder %s21, 1
      %p81 = por %p79, %p80
      %p82 = scmp.ne.s32.totalorder %s73, %s74
      %p83 = scmp.eq.s32.totalorder %s21, 0
      %p84 = por %p82, %p83
      %p85 = scmp.ne.s32.totalorder %s73, %s74
      %p86 = scmp.eq.s32.totalorder %s22, 1
      %p87 = por %p85, %p86
      %p89 = scmp.ne.s32.totalorder %s74, %s88
      %p90 = scmp.eq.s32.totalorder %s22, 0
      %p91 = por %p89, %p90
      %s93 = sadd.s32 %s92, 1
      %p96 = scmp.eq.s32.totalorder %s16, 1
      %p97 = scmp.ne.s32.totalorder %s92, %s94
      %p98 = scmp.eq.s32.totalorder %s16, 0
      %p99 = por %p97, %p98
      %p100 = scmp.ne.s32.totalorder %s92, %s94
      %p101 = scmp.eq.s32.totalorder %s21, 1
      %p102 = por %p100, %p101
      %p103 = scmp.ne.s32.totalorder %s94, %s95
      %p104 = scmp.eq.s32.totalorder %s21, 0
      %p105 = por %p103, %p104
      %p106 = scmp.ne.s32.totalorder %s94, %s95
      %p107 = scmp.eq.s32.totalorder %s22, 1
      %p108 = por %p106, %p107
      %p110 = scmp.ne.s32.totalorder %s95, %s109
      %p111 = scmp.eq.s32.totalorder %s22, 0
      %p112 = por %p110, %p111
      %s113 = ssub.s32 %s16, %s23
      %p114 = scmp.eq.s32.totalorder %s113, 0
      %s116 = sadd.s32 %s115, 1
      %s117 = scalar_select %p114, %s115, %s116
      %p120 = pneg %p114
      %p121 = scmp.eq.s32.totalorder %s16, 1
      %p122 = por %p120, %p121
      %p123 = scmp.ne.s32.totalorder %s115, %s118
      %p124 = scmp.eq.s32.totalorder %s16, 0
      %p125 = por %p123, %p124
      %p126 = scmp.ne.s32.totalorder %s115, %s118
      %p127 = scmp.eq.s32.totalorder %s21, 1
      %p128 = por %p126, %p127
      %p129 = scmp.ne.s32.totalorder %s118, %s119
      %p130 = scmp.eq.s32.totalorder %s21, 0
      %p131 = por %p129, %p130
      %p132 = scmp.ne.s32.totalorder %s118, %s119
      %p133 = scmp.eq.s32.totalorder %s22, 1
      %p134 = por %p132, %p133
      %p136 = scmp.ne.s32.totalorder %s119, %s135
      %p137 = scmp.eq.s32.totalorder %s22, 0
      %p138 = por %p136, %p137
      %p139 = scmp.le.s32.totalorder 1, %s16
      %p140 = scmp.lt.s32.totalorder %s16, 3
      %p141 = pnand %p139, %p140
      %p142 = pneg %p141
      // Predicated region
      $region9: #{tpu_custom_call.1} parent=5 // pred_check
        _
      $region10: #{tpu_custom_call.1} parent=5 // pred_check_branch
        %144 = sbr.rel (%p141) target = $region12
      $region11: #{tpu_custom_call.1} parent=5 // pred_region
        %s145 = ssub.s32 %s16, 1
        // Predicated region
        $region13: #{tpu_custom_call.1} parent=11 // pred_check
          %p146 = pneg %p63
        $region14: #{tpu_custom_call.1} parent=11 // pred_check_branch
          %148 = sbr.rel (%p146) target = $region16
        $region15: #{tpu_custom_call.1} parent=11 // pred_region
          _
        $region16: #{tpu_custom_call.1} parent=11 // pred_fallthru
          _
        // Predicated region
        $region17: #{tpu_custom_call.1} parent=11 // pred_check
          %p149 = pneg %p84
        $region18: #{tpu_custom_call.1} parent=11 // pred_check_branch
          %151 = sbr.rel (%p149) target = $region20
        $region19: #{tpu_custom_call.1} parent=11 // pred_region
          _
        $region20: #{tpu_custom_call.1} parent=11 // pred_fallthru
          _
        // Predicated region
        $region21: #{tpu_custom_call.1} parent=11 // pred_check
          %p152 = pneg %p105
        $region22: #{tpu_custom_call.1} parent=11 // pred_check_branch
          %154 = sbr.rel (%p152) target = $region24
        $region23: #{tpu_custom_call.1} parent=11 // pred_region
          _
        $region24: #{tpu_custom_call.1} parent=11 // pred_fallthru
          _
      $region12: #{tpu_custom_call.1} parent=5 // pred_fallthru
        _
      %p155 = scmp.lt.s32.totalorder %s16, 2
      // Predicated region
      $region25: #{tpu_custom_call.1} parent=5 // pred_check
        %p156 = pneg %p155
      $region26: #{tpu_custom_call.1} parent=5 // pred_check_branch
        %158 = sbr.rel (%p156) target = $region28
      $region27: #{tpu_custom_call.1} parent=5 // pred_region
        // Predicated region
        $region29: #{tpu_custom_call.1} parent=27 // pred_check
          %p159 = pneg %p36
        $region30: #{tpu_custom_call.1} parent=27 // pred_check_branch
          %161 = sbr.rel (%p159) target = $region32
        $region31: #{tpu_custom_call.1} parent=27 // pred_region
          %s162 = sand.u32 %s26, 1
          %s163 = scalar_lea.sflag [#allocation3], %s162
          %s164 = sand.u32 %s26, 1
          %s165 = smul.addr %s164, 64
          %s166 = scalar_lea.vmem [#allocation2], %s165
          %168 = vsyncadd %s163, 0
          %s169 = smul.addr %s16, 8
          %s170 = smul.addr %s169, 8
          %s171 = scalar_lea.hbm %s0, %s170
          %s172 = sshll.u32 %s171, 4
          %s173 = int_to_ptr.hbm [resolvable:$true] %s172
          %s174 = sshll.u32 %s166, 4
          %s175 = int_to_ptr.vmem [resolvable:$true] %s174
          %180 = dma.hbm_to_vmem [thread:$0]  %s173, 1024, %s175, %s163, 256, 256, 16
        $region32: #{tpu_custom_call.1} parent=27 // pred_fallthru
          _
      $region28: #{tpu_custom_call.1} parent=5 // pred_fallthru
        _
      %p181 = scmp.le.s32.totalorder 1, %s16
      %p182 = scmp.lt.s32.totalorder %s16, 3
      %p183 = pnand %p181, %p182
      %p184 = pneg %p183
      // Predicated region
      $region33: #{tpu_custom_call.1} parent=5 // pred_check
        _
      $region34: #{tpu_custom_call.1} parent=5 // pred_check_branch
        %186 = sbr.rel (%p183) target = $region36
      $region35: #{tpu_custom_call.1} parent=5 // pred_region
        %s187 = ssub.s32 %s16, 1
        %s188 = sand.u32 %s29, 1
        %s189 = scalar_lea.sflag [#allocation3], %s188
        %s190 = sand.u32 %s29, 1
        %s191 = smul.addr %s190, 64
        %s192 = scalar_lea.vmem [#allocation2], %s191
        // Predicated region
        $region37: #{tpu_custom_call.1} parent=35 // pred_check
          %p193 = pneg %p42
        $region38: #{tpu_custom_call.1} parent=35 // pred_check_branch
          %195 = sbr.rel (%p193) target = $region40
        $region39: #{tpu_custom_call.1} parent=35 // pred_region
          %197 = dma.done %s189, 1024
        $region40: #{tpu_custom_call.1} parent=35 // pred_fallthru
          _
        %s198 = sand.u32 %s29, 1
        %s199 = scalar_lea.sflag [#allocation3], %s198
        %s200 = sand.u32 %s29, 1
        %s201 = smul.addr %s200, 64
        %s202 = scalar_lea.vmem [#allocation2], %s201
        %p203 = pneg %p42
        %p204 = pneg %p39
        %p205 = pneg %p63
        %p206 = pneg %p60
        %p207 = pneg %p84
        %p208 = pneg %p81
        %p209 = pneg %p105
        %p210 = pneg %p102
        %p211 = pneg %p131
        %p212 = pneg %p128
        %s213 = sand.u32 %s118, 1
        %s214 = scalar_lea.sflag [#allocation4], %s213
        %s215 = sand.u32 %s118, 1
        %s216 = smul.addr %s215, 64
        %s217 = scalar_lea.vmem [#allocation5], %s216
        %v218 = vld [vmem:[%s192] sm:$0xff]
        %v219 = vld [vmem:[%s192 + $0x8] sm:$0xff]
        %v220 = vld [vmem:[%s192 + $0x10] sm:$0xff]
        %v221 = vld [vmem:[%s192 + $0x18] sm:$0xff]
        %v222 = vld [vmem:[%s192 + $0x20] sm:$0xff]
        %v223 = vld [vmem:[%s192 + $0x28] sm:$0xff]
        %v224 = vld [vmem:[%s192 + $0x30] sm:$0xff]
        %v225 = vld [vmem:[%s192 + $0x38] sm:$0xff]
        %v226 = vadd.f32 %v218, %v219
        %227 = vadd.xlane.f32.xlu0 %v226
        %v228 = vpop.xlane.xlu0 %227
        %v229 = vadd.f32 %v220, %v221
        %230 = vadd.xlane.f32.xlu0 %v229
        %v231 = vpop.xlane.xlu0 %230
        %v232 = vadd.f32 %v222, %v223
        %233 = vadd.xlane.f32.xlu0 %v232
        %v234 = vpop.xlane.xlu0 %233
        %v235 = vadd.f32 %v224, %v225
        %236 = vadd.xlane.f32.xlu0 %v235
        %v237 = vpop.xlane.xlu0 %236
        %v238 = vmul.f32 %v228, 0.00390625
        %v239 = vmul.f32 %v231, 0.00390625
        %v240 = vmul.f32 %v234, 0.00390625
        %v241 = vmul.f32 %v237, 0.00390625
        %v242 = vld [vmem:[%s1] sm:$0xff]
        %v243 = vld [vmem:[%s1 + $0x8] sm:$0xff]
        %v244 = vld [vmem:[%s1 + $0x10] sm:$0xff]
        %v245 = vld [vmem:[%s1 + $0x18] sm:$0xff]
        %v246 = vld [vmem:[%s3] sm:$0x1]
        %v251 = vlaneseq
        %v252 = vand.u32 %v251, 127
        %v253 = vperm.slane %v238, %v252
        %v254 = vadd.s32 %v252, 4294967288
        %v255 = vperm.slane %v239, %v254
        %vm256 = vcmask 130112
        %v257 = vsel %vm256, %v255, %v253
        %v258 = vadd.s32 %v252, 4294967280
        %v259 = vperm.slane %v240, %v258
        %vm260 = vcmask 195712
        %v261 = vsel %vm260, %v259, %v257
        %v262 = vadd.s32 %v252, 4294967272
        %v263 = vperm.slane %v241, %v262
        %vm264 = vcmask 261312
        %v265 = vsel %vm264, %v263, %v261
        %vm266 = vcmask 261120
        %v267 = vsel %vm266, %v265, 0
        %269 = vmatpush.msra.mxu0 0.0
        %270 = vmatpush.msra.mxu0 0.0
        %271 = vmatpush.msra.mxu0 0.0
        %272 = vmatpush.msra.mxu0 0.0
        %273 = vmatpush.msra.mxu0 0.0
        %274 = vmatpush.msra.mxu0 0.0
        %275 = vmatpush.msra.mxu0 0.0
        %276 = vmatpush.msra.mxu0 0.0
        %277 = vmatpush.msra.mxu0 0.0
        %278 = vmatpush.msra.mxu0 0.0
        %279 = vmatpush.msra.mxu0 0.0
        %280 = vmatpush.msra.mxu0 0.0
        %281 = vmatpush.msra.mxu0 %v245
        %282 = vmatpush.msra.mxu0 %v244
        %283 = vmatpush.msra.mxu0 %v243
        %284 = vmatpush.msra.mxu0 %v242
        %285 = vmatmul.f32.gmra.mxu0 %v267
        %v286 = vpop.f32.mrf.mxu0
        %v287 = vadd.f32 %v246, %v286
        %288 = vdwg.mxu0
        %v289 = vmax.f32 %v287, 0.0
        %v290 = vld [vmem:[%s2] sm:$0x3]
        %v291 = vld [vmem:[%s3 + $0x1] sm:$0x1]
        %vm292 = vcmask 15360
        %v294 = vsel %vm292, %v289, 0
        %vm296 = vcmask 1041408
        %v298 = vsel %vm296, %v290, 0
        %300 = vmatpush.msra.mxu0 0.0
        %301 = vmatpush.msra.mxu0 0.0
        %302 = vmatpush.msra.mxu0 0.0
        %303 = vmatpush.msra.mxu0 0.0
        %304 = vmatpush.msra.mxu0 0.0
        %305 = vmatpush.msra.mxu0 0.0
        %306 = vmatpush.msra.mxu0 0.0
        %307 = vmatpush.msra.mxu0 0.0
        %308 = vmatpush.msra.mxu0 0.0
        %309 = vmatpush.msra.mxu0 0.0
        %310 = vmatpush.msra.mxu0 0.0
        %311 = vmatpush.msra.mxu0 0.0
        %312 = vmatpush.msra.mxu0 0.0
        %313 = vmatpush.msra.mxu0 0.0
        %314 = vmatpush.msra.mxu0 0.0
        %315 = vmatpush.msra.mxu0 %v298
        %316 = vmatmul.f32.gmra.mxu0 %v294
        %v317 = vpop.f32.mrf.mxu0
        %v318 = vadd.f32 %v291, %v317
        %319 = vdwg.mxu0
        %v320 = vxor.u32 %v318, 2147483648
        %v321 = vmul.f32 %v320, 1.442695
        %v322 = vpow.pop %v321
        %v323 = vadd.f32 %v322, 1.0
        %v324 = vrcp.pop %v323
        %v325 = vmul.f32 %v323, %v324
        %v326 = vsub.f32 1.0, %v325
        %v327 = vmul.f32 %v324, %v326
        %v328 = vadd.f32 %v324, %v327
        %vm329 = vweird.f32 %v323
        %vm330 = vweird.f32 %v324
        %vm331 = vmor %vm329, %vm330
        %v332 = vsel %vm331, %v324, %v328
        %v333 = vand.u32 2147483647, %v323
        %vm334 = vcmp.eq.f32.partialorder %v333, 8.507059e+37
        %v335 = vand.u32 %v323, 2147483648
        %v336 = vor.u32 1.1754944e-38, %v335
        %v337 = vsel %vm334, %v336, %v332
        %v338 = vmul.f32 1.0, %v337
        %v339 = vperm.slane %v338, 0
        %v340 = vlaneseq
        %v341 = vshrl.u32 %v340, 7
        %343 = vset.pattern.permute.xlu0 %v341
        %344 = vperm.xlu0 %343, %v339
        %v345 = vpop.permute.xlu0 %344
        %v346 = vlaneseq
        %v347 = vshrl.u32 %v346, 7
        %v348 = vadd.s32 %v347, 8
        %349 = vset.pattern.permute.xlu0 %v348
        %350 = vperm.xlu0 %349, %v339
        %v351 = vpop.permute.xlu0 %350
        %v352 = vlaneseq
        %v353 = vshrl.u32 %v352, 7
        %v354 = vadd.s32 %v353, 16
        %355 = vset.pattern.permute.xlu0 %v354
        %356 = vperm.xlu0 %355, %v339
        %v357 = vpop.permute.xlu0 %356
        %v358 = vlaneseq
        %v359 = vshrl.u32 %v358, 7
        %v360 = vadd.s32 %v359, 24
        %361 = vset.pattern.permute.xlu0 %v360
        %362 = vperm.xlu0 %361, %v339
        %v363 = vpop.permute.xlu0 %362
        %v364 = vmul.f32 %v218, %v345
        %v365 = vmul.f32 %v219, %v345
        %v366 = vmul.f32 %v220, %v351
        %v367 = vmul.f32 %v221, %v351
        %v368 = vmul.f32 %v222, %v357
        %v369 = vmul.f32 %v223, %v357
        %v370 = vmul.f32 %v224, %v363
        %v371 = vmul.f32 %v225, %v363
        %372 = vst [vmem:[%s217] sm:$0xff] %v364
        %373 = vst [vmem:[%s217 + $0x8] sm:$0xff] %v365
        %374 = vst [vmem:[%s217 + $0x10] sm:$0xff] %v366
        %375 = vst [vmem:[%s217 + $0x18] sm:$0xff] %v367
        %376 = vst [vmem:[%s217 + $0x20] sm:$0xff] %v368
        %377 = vst [vmem:[%s217 + $0x28] sm:$0xff] %v369
        %378 = vst [vmem:[%s217 + $0x30] sm:$0xff] %v370
        %379 = vst [vmem:[%s217 + $0x38] sm:$0xff] %v371
        %s380 = sand.u32 %s118, 1
        %s381 = scalar_lea.sflag [#allocation4], %s380
        %s382 = sand.u32 %s118, 1
        %s383 = smul.addr %s382, 64
        %s384 = scalar_lea.vmem [#allocation5], %s383
        // Predicated region
        $region41: #{tpu_custom_call.1} parent=35 // pred_check
          %p385 = pneg %p128
        $region42: #{tpu_custom_call.1} parent=35 // pred_check_branch
          %387 = sbr.rel (%p385) target = $region44
        $region43: #{tpu_custom_call.1} parent=35 // pred_region
          %389 = vsyncadd %s381, 0
          %s390 = smul.addr %s21, 8
          %s391 = smul.addr %s390, 8
          %s392 = scalar_lea.hbm %s4, %s391
          %s393 = sshll.u32 %s384, 4
          %s394 = int_to_ptr.vmem [resolvable:$true] %s393
          %s395 = sshll.u32 %s392, 4
          %s396 = int_to_ptr.hbm [resolvable:$true] %s395
          %401 = dma.vmem_to_hbm [thread:$0]  %s394, 1024, %s396, %s381, 256, 256, 16
        $region44: #{tpu_custom_call.1} parent=35 // pred_fallthru
          _
      $region36: #{tpu_custom_call.1} parent=5 // pred_fallthru
        _
      %p402 = scmp.le.s32.totalorder 2, %s16
      // Predicated region
      $region45: #{tpu_custom_call.1} parent=5 // pred_check
        %p403 = pneg %p402
      $region46: #{tpu_custom_call.1} parent=5 // pred_check_branch
        %405 = sbr.rel (%p403) target = $region48
      $region47: #{tpu_custom_call.1} parent=5 // pred_region
        %s406 = ssub.s32 %s16, 2
        // Predicated region
        $region49: #{tpu_custom_call.1} parent=47 // pred_check
          %p407 = pneg %p134
        $region50: #{tpu_custom_call.1} parent=47 // pred_check_branch
          %409 = sbr.rel (%p407) target = $region52
        $region51: #{tpu_custom_call.1} parent=47 // pred_region
          %s410 = sand.u32 %s119, 1
          %s411 = scalar_lea.sflag [#allocation4], %s410
          %s412 = sand.u32 %s119, 1
          %s413 = smul.addr %s412, 64
          %s414 = scalar_lea.vmem [#allocation5], %s413
          %416 = dma.done %s411, 1024
        $region52: #{tpu_custom_call.1} parent=47 // pred_fallthru
          _
      $region48: #{tpu_custom_call.1} parent=5 // pred_fallthru
        _
    $region6: #{tpu_custom_call.1} parent=1 // loop_footer
      %s20 = sadd.s32 1, %s16
    $region7: #{tpu_custom_call.1} parent=1 // loop_footer_branch
      %15 = sbr.rel target = $region3
    $region8: #{tpu_custom_call.1} parent=1 // loop_exit
      _
    %417 = vsyncpa [#allocation3], 1
    %s418 = scalar_lea.sflag [#allocation3], 1
    %419 = vsyncpa %s418, 1
    %420 = vsyncpa [#allocation4], 1
    %s421 = scalar_lea.sflag [#allocation4], 1
    %422 = vsyncpa %s421, 1

</llo_original>
